<compile_context>
chip_gen: v7x
topology: tpu7x:2x2x1
jax: 0.10.0
libtpu: 0.0.40
codegen_flags: <defaults>
</compile_context>

<pallas_src>
import functools

import jax
import jax.numpy as jnp
from jax import lax
from jax.experimental import pallas as pl
from jax.experimental.pallas import tpu as pltpu


def _w_discriminator_kernel(x_ref, w0_ref, w1_ref, w2_ref, b_ref, out_ref, *,
                            bf16_epilogue):
    bpk = b_ref[...]                              # (5, H) f32 — one vreg-ish tile
    wf = bpk[3:4, :].astype(jnp.bfloat16)         # final-layer weight, (1, H) bf16
    bf = bpk[4:5, 0:1]                            # final-layer bias, (1, 1) f32

    if bf16_epilogue:
        b0 = bpk[0:1, :].astype(jnp.bfloat16)
        b1 = bpk[1:2, :].astype(jnp.bfloat16)
        b2 = bpk[2:3, :].astype(jnp.bfloat16)
    else:
        b0 = bpk[0:1, :]
        b1 = bpk[1:2, :]
        b2 = bpk[2:3, :]

    x = x_ref[...]
    if x.dtype != jnp.bfloat16:                   # no-op when caller passes bf16
        x = x.astype(jnp.bfloat16)

    def layer(h, w_ref, b):
        # bf16 MXU matmul with f32 accumulation.
        acc = jnp.dot(h, w_ref[...], preferred_element_type=jnp.float32)
        if bf16_epilogue:
            # v6e/v7x: bias-add + ReLU on packed bf16 vregs; no extra re-cast.
            return jnp.maximum(acc.astype(jnp.bfloat16) + b, 0)
        # v5-class: f32 VPU math, single cast back to bf16 for the next matmul.
        return jnp.maximum(acc + b, 0.0).astype(jnp.bfloat16)

    h = layer(x, w0_ref, b0)
    h = layer(h, w1_ref, b1)
    h = layer(h, w2_ref, b2)

    # Final Linear(H, 1): contract H on the MXU, producing the lane-dense
    # (1, TB) output row directly (batch on lanes, no XLU transpose of h).
    logits = lax.dot_general(wf, h, (((1,), (1,)), ((), ())),
                             preferred_element_type=jnp.float32)   # (1, TB)
    out_ref[...] = logits + bf


def _round_up(n, m):
    return ((n + m - 1) // m) * m


def _has_bf16_vpu():
    """True on chips with a bf16 VPU datapath (v6e / v7x); False on v5 and older."""
    try:
        kind = jax.devices()[0].device_kind.lower()
    except Exception:
        return False
    return not any(t in kind for t in ("v2", "v3", "v4", "v5"))


@functools.partial(jax.jit, static_argnames=("block_rows",))
def w_discriminator_forward(x, kernel_params, *, block_rows=1024):
    """x: (B, input_dim) f32 or bf16. Returns (B,) float32 (matches res.view(-1))."""
    w0, w1, w2, b_pack = kernel_params
    B, D = x.shape
    H = w0.shape[1]

    # ---- Batch tiling ------------------------------------------------------
    # TB: largest multiple of 128 (<= block_rows) dividing round_up(B, 128), so
    # padding waste is <128 rows; prefer a TB that yields >=2 grid steps so the
    # batch axis can be split across both TensorCores on v7x.
    block_rows_eff = max(128, (block_rows // 128) * 128)
    B_pad = _round_up(B, 128)
    candidates = [t for t in range(128, min(block_rows_eff, B_pad) + 1, 128)
                  if B_pad % t == 0]
    multi = [t for t in candidates if B_pad // t >= 2]
    TB = max(multi) if multi else max(candidates)
    n_tiles = B_pad // TB
    if B_pad != B:
        x = jnp.pad(x, ((0, B_pad - B), (0, 0)))

    bf16_epilogue = _has_bf16_vpu()

    # ---- Explicit VMEM budget ---------------------------------------------
    # Resident weights/biases are single-buffered (Buffered(1)); only the x
    # stream and the (1, TB) output row are double-buffered by the pipeline.
    x_item = jnp.dtype(x.dtype).itemsize
    weight_bytes = (D * H + 2 * H * H) * 2            # bf16 weights, 1 buffer each
    bias_bytes = 5 * H * 4                            # packed f32 bias row
    stream_bytes = 2 * TB * D * x_item + 2 * TB * 4   # x in + out row, 2 buffers
    act_bytes = 8 * TB * H * 4                        # activation / temp headroom
    vmem_limit = int(1.5 * (weight_bytes + bias_bytes + stream_bytes + act_bytes))
    vmem_limit = max(vmem_limit, 8 << 20)
    vmem_limit = min(vmem_limit, 120 << 20)

    kernel = functools.partial(_w_discriminator_kernel,
                               bf16_epilogue=bf16_epilogue)

    out = pl.pallas_call(
        kernel,
        out_shape=jax.ShapeDtypeStruct((1, B_pad), jnp.float32),
        grid=(n_tiles,),
        in_specs=[
            # x: streamed / auto double-buffered over the batch grid.
            pl.BlockSpec((TB, D), lambda i: (i, 0)),
            # weights + packed biases: constant index_map -> VMEM-resident,
            # Buffered(1) so they are not double-buffered.
            pl.BlockSpec((D, H), lambda i: (0, 0), pipeline_mode=pl.Buffered(1)),
            pl.BlockSpec((H, H), lambda i: (0, 0), pipeline_mode=pl.Buffered(1)),
            pl.BlockSpec((H, H), lambda i: (0, 0), pipeline_mode=pl.Buffered(1)),
            pl.BlockSpec((5, H), lambda i: (0, 0), pipeline_mode=pl.Buffered(1)),
        ],
        out_specs=pl.BlockSpec((1, TB), lambda i: (0, i)),   # lane-dense output
        compiler_params=pltpu.CompilerParams(
            dimension_semantics=("parallel",),
            vmem_limit_bytes=vmem_limit),
    )(x, w0, w1, w2, b_pack)
    return out.reshape(-1)[:B]


def init_params(key, input_dim, hidden_size, layers=3):
    """Deterministic init mirroring the module's __init__ (f32, (in,out) weights).

    Final layer weight scaled by 0.1, final bias zeroed, as in the module.
    """
    params = []
    in_dim = input_dim
    for _ in range(layers):
        key, kw, kb = jax.random.split(key, 3)
        bound = 1.0 / jnp.sqrt(in_dim)
        w = jax.random.uniform(kw, (in_dim, hidden_size), jnp.float32,
                               minval=-bound, maxval=bound)
        b = jax.random.uniform(kb, (1, hidden_size), jnp.float32,
                               minval=-bound, maxval=bound)
        params.append((w, b))
        in_dim = hidden_size
    key, kw, kb = jax.random.split(key, 3)
    bound = 1.0 / jnp.sqrt(hidden_size)
    wf = jax.random.uniform(kw, (hidden_size, 1), jnp.float32,
                            minval=-bound, maxval=bound) * 0.1
    bf = jnp.zeros((1, 1), jnp.float32)  # final.bias.data.mul_(0.0)
    params.append((wf, bf))
    return params


def prepare_params(params):
    """Pack f32 reference params into the kernel layout (5 operands total)."""
    (w0, b0), (w1, b1), (w2, b2), (wf, bf) = params
    H = w0.shape[1]
    b_pack = jnp.concatenate([
        b0.reshape(1, H).astype(jnp.float32),
        b1.reshape(1, H).astype(jnp.float32),
        b2.reshape(1, H).astype(jnp.float32),
        wf.reshape(1, H).astype(jnp.float32),                    # final W as row
        jnp.broadcast_to(bf.reshape(1, 1), (1, H)).astype(jnp.float32),
    ], axis=0)                                                   # (5, H)
    return (w0.astype(jnp.bfloat16),
            w1.astype(jnp.bfloat16),
            w2.astype(jnp.bfloat16),
            b_pack)


def reference_forward(x, params):
    (w0, b0), (w1, b1), (w2, b2), (wf, bf) = params
    h = jnp.maximum(x @ w0 + b0, 0.0)
    h = jnp.maximum(h @ w1 + b1, 0.0)
    h = jnp.maximum(h @ w2 + b2, 0.0)
    return (h @ wf + bf).reshape(-1)


if __name__ == "__main__":
    key = jax.random.PRNGKey(0)
    batch, input_dim, hidden = 8, 16, 32

    k_x, k_p, k_x2 = jax.random.split(key, 3)
    x = jax.random.normal(k_x, (batch, input_dim), jnp.float32)
    params = init_params(k_p, input_dim, hidden, layers=3)
    kparams = prepare_params(params)

    out = jax.block_until_ready(w_discriminator_forward(x, kparams))
    ref = reference_forward(x, params)
    assert out.shape == (batch,)
    # bf16 matmul operands (and bf16 epilogue on v6e/v7x) -> loosened tolerance.
    assert jnp.allclose(out, ref, atol=5e-2, rtol=5e-2), \
        float(jnp.max(jnp.abs(out - ref)))

    # Multi-tile grid; adaptive TB keeps padding waste <128 rows (640 -> 5x128).
    big_b = 640
    x2 = jax.random.normal(k_x2, (big_b, input_dim), jnp.float32)
    out2 = jax.block_until_ready(w_discriminator_forward(x2, kparams))
    ref2 = reference_forward(x2, params)
    assert out2.shape == (big_b,)
    assert jnp.allclose(out2, ref2, atol=5e-2, rtol=5e-2), \
        float(jnp.max(jnp.abs(out2 - ref2)))

    # bf16 input path: no wrapper-side cast, halves the streamed HBM bytes.
    out3 = jax.block_until_ready(
        w_discriminator_forward(x2.astype(jnp.bfloat16), kparams))
    assert out3.shape == (big_b,)
    assert jnp.allclose(out3, ref2, atol=6e-2, rtol=6e-2), \
        float(jnp.max(jnp.abs(out3 - ref2)))

    print("KERNEL_OK")
</pallas_src>

<mosaic_0001>
module attributes {stable_mosaic.version = 11 : i64} {
  func.func @_w_discriminator_kernel(%arg0: i32, %arg1: memref<128x16xf32, #tpu.memory_space<vmem>>, %arg2: memref<16x32xbf16, #tpu.memory_space<vmem>>, %arg3: memref<32x32xbf16, #tpu.memory_space<vmem>>, %arg4: memref<32x32xbf16, #tpu.memory_space<vmem>>, %arg5: memref<5x32xf32, #tpu.memory_space<vmem>>, %arg6: memref<1x128xf32, #tpu.memory_space<vmem>>) attributes {dimension_semantics = [#tpu.dimension_semantics<parallel>], iteration_bounds = array<i64: 1>, scalar_prefetch = 0 : i64, scratch_operands = 0 : i64, tpu.core_type = #tpu.core_type<tc>, window_params = [{transform_indices = @transform_0, window_bounds = array<i64: 128, 16>}, {pipeline_mode = #tpu.pipeline_mode<synchronous>, transform_indices = @transform_1, window_bounds = array<i64: 16, 32>}, {pipeline_mode = #tpu.pipeline_mode<synchronous>, transform_indices = @transform_2, window_bounds = array<i64: 32, 32>}, {pipeline_mode = #tpu.pipeline_mode<synchronous>, transform_indices = @transform_3, window_bounds = array<i64: 32, 32>}, {pipeline_mode = #tpu.pipeline_mode<synchronous>, transform_indices = @transform_4, window_bounds = array<i64: 5, 32>}, {transform_indices = @transform_5, window_bounds = array<i64: 1, 128>}]} {
    %c0 = arith.constant 0 : index
    %c0_0 = arith.constant 0 : index
    %0 = vector.load %arg5[%c0, %c0_0] : memref<5x32xf32, #tpu.memory_space<vmem>>, vector<5x32xf32>
    %1 = vector.extract_strided_slice %0 {offsets = [3, 0], sizes = [1, 32], strides = [1, 1]} : vector<5x32xf32> to vector<1x32xf32>
    %2 = arith.truncf %1 : vector<1x32xf32> to vector<1x32xbf16>
    %3 = vector.extract_strided_slice %0 {offsets = [4, 0], sizes = [1, 1], strides = [1, 1]} : vector<5x32xf32> to vector<1x1xf32>
    %4 = vector.extract_strided_slice %0 {offsets = [0, 0], sizes = [1, 32], strides = [1, 1]} : vector<5x32xf32> to vector<1x32xf32>
    %5 = arith.truncf %4 : vector<1x32xf32> to vector<1x32xbf16>
    %6 = vector.extract_strided_slice %0 {offsets = [1, 0], sizes = [1, 32], strides = [1, 1]} : vector<5x32xf32> to vector<1x32xf32>
    %7 = arith.truncf %6 : vector<1x32xf32> to vector<1x32xbf16>
    %8 = vector.extract_strided_slice %0 {offsets = [2, 0], sizes = [1, 32], strides = [1, 1]} : vector<5x32xf32> to vector<1x32xf32>
    %9 = arith.truncf %8 : vector<1x32xf32> to vector<1x32xbf16>
    %c0_1 = arith.constant 0 : index
    %c0_2 = arith.constant 0 : index
    %10 = vector.load %arg1[%c0_1, %c0_2] : memref<128x16xf32, #tpu.memory_space<vmem>>, vector<128x16xf32>
    %11 = arith.truncf %10 : vector<128x16xf32> to vector<128x16xbf16>
    %c0_3 = arith.constant 0 : index
    %c0_4 = arith.constant 0 : index
    %12 = vector.load %arg2[%c0_3, %c0_4] : memref<16x32xbf16, #tpu.memory_space<vmem>>, vector<16x32xbf16>
    %cst = arith.constant dense<0.000000e+00> : vector<128x32xf32>
    %13 = tpu.matmul %11, %12, %cst {dimension_numbers = #tpu.dot_dimension_numbers<[1], [0], [0], [1], [0, 0, 1, 1], [], []>} : vector<128x16xbf16>, vector<16x32xbf16>, vector<128x32xf32> -> vector<128x32xf32>
    %14 = arith.truncf %13 : vector<128x32xf32> to vector<128x32xbf16>
    %15 = vector.broadcast %5 : vector<1x32xbf16> to vector<128x32xbf16>
    %16 = arith.addf %14, %15 : vector<128x32xbf16>
    %cst_5 = arith.constant 0.000000e+00 : bf16
    %17 = vector.broadcast %cst_5 : bf16 to vector<128x32xbf16>
    %18 = arith.maximumf %16, %17 : vector<128x32xbf16>
    %c0_6 = arith.constant 0 : index
    %c0_7 = arith.constant 0 : index
    %19 = vector.load %arg3[%c0_6, %c0_7] : memref<32x32xbf16, #tpu.memory_space<vmem>>, vector<32x32xbf16>
    %cst_8 = arith.constant dense<0.000000e+00> : vector<128x32xf32>
    %20 = tpu.matmul %18, %19, %cst_8 {dimension_numbers = #tpu.dot_dimension_numbers<[1], [0], [0], [1], [0, 0, 1, 1], [], []>} : vector<128x32xbf16>, vector<32x32xbf16>, vector<128x32xf32> -> vector<128x32xf32>
    %21 = arith.truncf %20 : vector<128x32xf32> to vector<128x32xbf16>
    %22 = vector.broadcast %7 : vector<1x32xbf16> to vector<128x32xbf16>
    %23 = arith.addf %21, %22 : vector<128x32xbf16>
    %cst_9 = arith.constant 0.000000e+00 : bf16
    %24 = vector.broadcast %cst_9 : bf16 to vector<128x32xbf16>
    %25 = arith.maximumf %23, %24 : vector<128x32xbf16>
    %c0_10 = arith.constant 0 : index
    %c0_11 = arith.constant 0 : index
    %26 = vector.load %arg4[%c0_10, %c0_11] : memref<32x32xbf16, #tpu.memory_space<vmem>>, vector<32x32xbf16>
    %cst_12 = arith.constant dense<0.000000e+00> : vector<128x32xf32>
    %27 = tpu.matmul %25, %26, %cst_12 {dimension_numbers = #tpu.dot_dimension_numbers<[1], [0], [0], [1], [0, 0, 1, 1], [], []>} : vector<128x32xbf16>, vector<32x32xbf16>, vector<128x32xf32> -> vector<128x32xf32>
    %28 = arith.truncf %27 : vector<128x32xf32> to vector<128x32xbf16>
    %29 = vector.broadcast %9 : vector<1x32xbf16> to vector<128x32xbf16>
    %30 = arith.addf %28, %29 : vector<128x32xbf16>
    %cst_13 = arith.constant 0.000000e+00 : bf16
    %31 = vector.broadcast %cst_13 : bf16 to vector<128x32xbf16>
    %32 = arith.maximumf %30, %31 : vector<128x32xbf16>
    %cst_14 = arith.constant dense<0.000000e+00> : vector<1x128xf32>
    %33 = tpu.matmul %2, %32, %cst_14 {dimension_numbers = #tpu.dot_dimension_numbers<[1], [1], [0], [0], [0, 0, 1, 0], [], []>} : vector<1x32xbf16>, vector<128x32xbf16>, vector<1x128xf32> -> vector<1x128xf32>
    %34 = vector.broadcast %3 : vector<1x1xf32> to vector<1x128xf32>
    %35 = arith.addf %33, %34 : vector<1x128xf32>
    %c0_15 = arith.constant 0 : index
    %c0_16 = arith.constant 0 : index
    %36 = vector.load %arg6[%c0_15, %c0_16] : memref<1x128xf32, #tpu.memory_space<vmem>>, vector<1x128xf32>
    tpu.vector_store %arg6[%c0_15, %c0_16], %35 {strides = array<i32>} : memref<1x128xf32, #tpu.memory_space<vmem>>, vector<1x128xf32>,
    return
  }
  func.func @transform_0(%arg0: i32) -> (i32, i32) {
    %c0_i32 = arith.constant 0 : i32
    %c0_i32_0 = arith.constant 0 : i32
    return %arg0, %c0_i32 : i32, i32
  }
  func.func @transform_1(%arg0: i32) -> (i32, i32) {
    %c0_i32 = arith.constant 0 : i32
    %c0_i32_0 = arith.constant 0 : i32
    %c0_i32_1 = arith.constant 0 : i32
    return %c0_i32, %c0_i32_0 : i32, i32
  }
  func.func @transform_2(%arg0: i32) -> (i32, i32) {
    %c0_i32 = arith.constant 0 : i32
    %c0_i32_0 = arith.constant 0 : i32
    %c0_i32_1 = arith.constant 0 : i32
    return %c0_i32, %c0_i32_0 : i32, i32
  }
  func.func @transform_3(%arg0: i32) -> (i32, i32) {
    %c0_i32 = arith.constant 0 : i32
    %c0_i32_0 = arith.constant 0 : i32
    %c0_i32_1 = arith.constant 0 : i32
    return %c0_i32, %c0_i32_0 : i32, i32
  }
  func.func @transform_4(%arg0: i32) -> (i32, i32) {
    %c0_i32 = arith.constant 0 : i32
    %c0_i32_0 = arith.constant 0 : i32
    %c0_i32_1 = arith.constant 0 : i32
    return %c0_i32, %c0_i32_0 : i32, i32
  }
  func.func @transform_5(%arg0: i32) -> (i32, i32) {
    %c0_i32 = arith.constant 0 : i32
    %c0_i32_0 = arith.constant 0 : i32
    return %c0_i32, %arg0 : i32, i32
  }
}

</mosaic_0001>

<llo_original>
// kernel: w_discriminator_forward.1
$region0: #{w_discriminator_forward.1}
  #allocation0 [shape = 'u32[]', space=smem, size = 0x4, offset = 0x4, fixed_abs, tag = 'smem constant byte address 0x4 - core index']
  #allocation1 [shape = 'u32[144,128]{1,0:T(1,128)}', space=vmem, size = 0x12000, scoped, tag = 'internal scratch']
  %s0 = inlined_call_operand.vmem [shape: f32[128,16], index: 0, kind: input, shape index: {}]
  %s1 = inlined_call_operand.vmem [shape: bf16[16,32], index: 1, kind: input, shape index: {}]
  %s2 = inlined_call_operand.vmem [shape: bf16[32,32], index: 2, kind: input, shape index: {}]
  %s3 = inlined_call_operand.vmem [shape: bf16[32,32], index: 3, kind: input, shape index: {}]
  %s4 = inlined_call_operand.vmem [shape: f32[5,32], index: 4, kind: input, shape index: {}]
  %s5 = inlined_call_operand.vmem [shape: f32[1,128], index: 5, kind: output, shape index: {}]
  %s6 = sld [smem:[#allocation0]]
  $region30: #{w_discriminator_forward.1} parent=0
    _
  %s8 = ssub.s32 1, %s6
  %s9 = scalar_select 0, %s8, %s6
  // Predicated region
  $region2: #{w_discriminator_forward.1} parent=0 // pred_check
    _
  $region3: #{w_discriminator_forward.1} parent=0 // pred_check_branch
    %11 = sbr.rel (0) target = $region5
  $region4: #{w_discriminator_forward.1} parent=0 // pred_region
    _
  $region5: #{w_discriminator_forward.1} parent=0 // pred_fallthru
    _
  // Predicated region
  $region6: #{w_discriminator_forward.1} parent=0 // pred_check
    _
  $region7: #{w_discriminator_forward.1} parent=0 // pred_check_branch
    %13 = sbr.rel (0) target = $region9
  $region8: #{w_discriminator_forward.1} parent=0 // pred_region
    _
  $region9: #{w_discriminator_forward.1} parent=0 // pred_fallthru
    _
  // Predicated region
  $region10: #{w_discriminator_forward.1} parent=0 // pred_check
    _
  $region11: #{w_discriminator_forward.1} parent=0 // pred_check_branch
    %15 = sbr.rel (0) target = $region13
  $region12: #{w_discriminator_forward.1} parent=0 // pred_region
    _
  $region13: #{w_discriminator_forward.1} parent=0 // pred_fallthru
    _
  // Predicated region
  $region14: #{w_discriminator_forward.1} parent=0 // pred_check
    _
  $region15: #{w_discriminator_forward.1} parent=0 // pred_check_branch
    %17 = sbr.rel (0) target = $region17
  $region16: #{w_discriminator_forward.1} parent=0 // pred_region
    _
  $region17: #{w_discriminator_forward.1} parent=0 // pred_fallthru
    _
  // Predicated region
  $region18: #{w_discriminator_forward.1} parent=0 // pred_check
    _
  $region19: #{w_discriminator_forward.1} parent=0 // pred_check_branch
    %19 = sbr.rel (0) target = $region21
  $region20: #{w_discriminator_forward.1} parent=0 // pred_region
    _
  $region21: #{w_discriminator_forward.1} parent=0 // pred_fallthru
    _
  %v21 = vld [vmem:[%s4] sm:$0x1f]
  %v22 = vpack.c.bf16 %v21, %v21
  %v23 = vld [vmem:[%s0] sm:$0xff]
  %v24 = vld [vmem:[%s0 + $0x8] sm:$0xff]
  %v25 = vld [vmem:[%s0 + $0x10] sm:$0xff]
  %v26 = vld [vmem:[%s0 + $0x18] sm:$0xff]
  %v27 = vld [vmem:[%s0 + $0x20] sm:$0xff]
  %v28 = vld [vmem:[%s0 + $0x28] sm:$0xff]
  %v29 = vld [vmem:[%s0 + $0x30] sm:$0xff]
  %v30 = vld [vmem:[%s0 + $0x38] sm:$0xff]
  %v31 = vld [vmem:[%s0 + $0x40] sm:$0xff]
  %v32 = vld [vmem:[%s0 + $0x48] sm:$0xff]
  %v33 = vld [vmem:[%s0 + $0x50] sm:$0xff]
  %v34 = vld [vmem:[%s0 + $0x58] sm:$0xff]
  %v35 = vld [vmem:[%s0 + $0x60] sm:$0xff]
  %v36 = vld [vmem:[%s0 + $0x68] sm:$0xff]
  %v37 = vld [vmem:[%s0 + $0x70] sm:$0xff]
  %v38 = vld [vmem:[%s0 + $0x78] sm:$0xff]
  %v39 = vpack.c.bf16 %v24, %v23
  %v40 = vpack.c.bf16 %v26, %v25
  %v41 = vpack.c.bf16 %v28, %v27
  %v42 = vpack.c.bf16 %v30, %v29
  %v43 = vpack.c.bf16 %v32, %v31
  %v44 = vpack.c.bf16 %v34, %v33
  %v45 = vpack.c.bf16 %v36, %v35
  %v46 = vpack.c.bf16 %v38, %v37
  %v47 = vld [vmem:[%s1] sm:$0xf]
  %v48 = vld [vmem:[%s1 + $0x4] sm:$0xf]
  %v51 = vunpack.c.l.b16 %v47
  %v52 = vunpack.c.l.b16 %v48
  %v53 = vpack.c.b16 %v52, %v51
  %vm55 = vcmask 130048
  %v57 = vsel %vm55, %v39, 0
  %v60 = vsel %vm55, %v40, 0
  %v63 = vsel %vm55, %v41, 0
  %v66 = vsel %vm55, %v42, 0
  %v69 = vsel %vm55, %v43, 0
  %v72 = vsel %vm55, %v44, 0
  %v75 = vsel %vm55, %v45, 0
  %v78 = vsel %vm55, %v46, 0
  %80 = vmatprep.subr.bf16.mxu0 0
  %81 = vmatpush1.bf16.msra.mxu0 %v53
  %82 = vmatprep.subr.bf16.mxu0 0
  %83 = vmatpush1.bf16.msra.mxu0 0
  %84 = vmatprep.subr.bf16.mxu0 0
  %85 = vmatpush1.bf16.msra.mxu0 0
  %86 = vmatprep.subr.bf16.mxu0 0
  %87 = vmatpush1.bf16.msra.mxu0 0
  %88 = vmatprep.subr.bf16.mxu0 0
  %89 = vmatpush1.bf16.msra.mxu0 0
  %90 = vmatprep.subr.bf16.mxu0 0
  %91 = vmatpush1.bf16.msra.mxu0 0
  %92 = vmatprep.subr.bf16.mxu0 0
  %93 = vmatpush1.bf16.msra.mxu0 0
  %94 = vmatprep.subr.bf16.mxu0 0
  %95 = vmatpush1.bf16.msra.mxu0 0
  %96 = vmatprep.subr.bf16.mxu0 0
  %97 = vmatpush1.bf16.msra.mxu0 0
  %98 = vmatprep.subr.bf16.mxu0 0
  %99 = vmatpush1.bf16.msra.mxu0 0
  %100 = vmatprep.subr.bf16.mxu0 0
  %101 = vmatpush1.bf16.msra.mxu0 0
  %102 = vmatprep.subr.bf16.mxu0 0
  %103 = vmatpush1.bf16.msra.mxu0 0
  %104 = vmatprep.subr.bf16.mxu0 0
  %105 = vmatpush1.bf16.msra.mxu0 0
  %106 = vmatprep.subr.bf16.mxu0 0
  %107 = vmatpush1.bf16.msra.mxu0 0
  %108 = vmatprep.subr.bf16.mxu0 0
  %109 = vmatpush1.bf16.msra.mxu0 0
  %110 = vmatprep.subr.bf16.mxu0 0
  %111 = vmatpush1.bf16.msra.mxu0 0
  %112 = vmatprep.mubr.bf16.mxu0 0
  %113 = vmatmul.mubr.bf16.gmra.mrb[0].mxu0 %v57
  %v114 = vpop.f32.mrb[0].mxu0
  %v115 = vadd.f32 0.0, %v114
  %v116 = vpop.f32.mrb[0].mxu0
  %v117 = vpop.f32.mrb[0].mxu0
  %v118 = vadd.f32 0.0, %v117
  %v119 = vpop.f32.mrb[0].mxu0
  %120 = vmatprep.mubr.bf16.mxu0 0
  %121 = vmatmul.mubr.bf16.gmra.mrb[0].mxu0 %v60
  %v122 = vpop.f32.mrb[0].mxu0
  %v123 = vadd.f32 0.0, %v122
  %v124 = vpop.f32.mrb[0].mxu0
  %v125 = vpop.f32.mrb[0].mxu0
  %v126 = vadd.f32 0.0, %v125
  %v127 = vpop.f32.mrb[0].mxu0
  %128 = vmatprep.mubr.bf16.mxu0 0
  %129 = vmatmul.mubr.bf16.gmra.mrb[0].mxu0 %v63
  %v130 = vpop.f32.mrb[0].mxu0
  %v131 = vadd.f32 0.0, %v130
  %v132 = vpop.f32.mrb[0].mxu0
  %v133 = vpop.f32.mrb[0].mxu0
  %v134 = vadd.f32 0.0, %v133
  %v135 = vpop.f32.mrb[0].mxu0
  %136 = vmatprep.mubr.bf16.mxu0 0
  %137 = vmatmul.mubr.bf16.gmra.mrb[0].mxu0 %v66
  %v138 = vpop.f32.mrb[0].mxu0
  %v139 = vadd.f32 0.0, %v138
  %v140 = vpop.f32.mrb[0].mxu0
  %v141 = vpop.f32.mrb[0].mxu0
  %v142 = vadd.f32 0.0, %v141
  %v143 = vpop.f32.mrb[0].mxu0
  %144 = vmatprep.mubr.bf16.mxu0 0
  %145 = vmatmul.mubr.bf16.gmra.mrb[0].mxu0 %v69
  %v146 = vpop.f32.mrb[0].mxu0
  %v147 = vadd.f32 0.0, %v146
  %v148 = vpop.f32.mrb[0].mxu0
  %v149 = vpop.f32.mrb[0].mxu0
  %v150 = vadd.f32 0.0, %v149
  %v151 = vpop.f32.mrb[0].mxu0
  %152 = vmatprep.mubr.bf16.mxu0 0
  %153 = vmatmul.mubr.bf16.gmra.mrb[0].mxu0 %v72
  %v154 = vpop.f32.mrb[0].mxu0
  %v155 = vadd.f32 0.0, %v154
  %v156 = vpop.f32.mrb[0].mxu0
  %v157 = vpop.f32.mrb[0].mxu0
  %v158 = vadd.f32 0.0, %v157
  %v159 = vpop.f32.mrb[0].mxu0
  %160 = vmatprep.mubr.bf16.mxu0 0
  %161 = vmatmul.mubr.bf16.gmra.mrb[0].mxu0 %v75
  %v162 = vpop.f32.mrb[0].mxu0
  %v163 = vadd.f32 0.0, %v162
  %v164 = vpop.f32.mrb[0].mxu0
  %v165 = vpop.f32.mrb[0].mxu0
  %v166 = vadd.f32 0.0, %v165
  %v167 = vpop.f32.mrb[0].mxu0
  %168 = vmatprep.mubr.bf16.mxu0 0
  %169 = vmatmul.mubr.bf16.gmra.mrb[0].mxu0 %v78
  %v170 = vpop.f32.mrb[0].mxu0
  %v171 = vadd.f32 0.0, %v170
  %v172 = vpop.f32.mrb[0].mxu0
  %v173 = vpop.f32.mrb[0].mxu0
  %v174 = vadd.f32 0.0, %v173
  %v175 = vpop.f32.mrb[0].mxu0
  %176 = vdwg.mxu0
  %v177 = vpack.c.bf16 %v118, %v115
  %v178 = vpack.c.bf16 %v126, %v123
  %v179 = vpack.c.bf16 %v134, %v131
  %v180 = vpack.c.bf16 %v142, %v139
  %v181 = vpack.c.bf16 %v150, %v147
  %v182 = vpack.c.bf16 %v158, %v155
  %v183 = vpack.c.bf16 %v166, %v163
  %v184 = vpack.c.bf16 %v174, %v171
  %v186 = vpack.i.b16 %v22, %v22
  %v188 = vlaneseq
  %v189 = vshrl.u32 %v188, 7
  %v190 = vsub.s32 0, %v189
  %v191 = vrot.slane %v186, %v190
  %v192 = vadd.bf16 %v177, %v191
  %v193 = vadd.bf16 %v178, %v191
  %v194 = vadd.bf16 %v179, %v191
  %v195 = vadd.bf16 %v180, %v191
  %v196 = vadd.bf16 %v181, %v191
  %v197 = vadd.bf16 %v182, %v191
  %v198 = vadd.bf16 %v183, %v191
  %v199 = vadd.bf16 %v184, %v191
  %v200 = vmax.bf16 %v192, 0
  %v201 = vmax.bf16 %v193, 0
  %v202 = vmax.bf16 %v194, 0
  %v203 = vmax.bf16 %v195, 0
  %v204 = vmax.bf16 %v196, 0
  %v205 = vmax.bf16 %v197, 0
  %v206 = vmax.bf16 %v198, 0
  %v207 = vmax.bf16 %v199, 0
  %v208 = vld [vmem:[%s2] sm:$0xf]
  %v209 = vld [vmem:[%s2 + $0x4] sm:$0xf]
  %v210 = vld [vmem:[%s2 + $0x8] sm:$0xf]
  %v211 = vld [vmem:[%s2 + $0xc] sm:$0xf]
  %v216 = vunpack.c.l.b16 %v208
  %v217 = vunpack.c.l.b16 %v209
  %v218 = vunpack.c.l.b16 %v210
  %v219 = vunpack.c.l.b16 %v211
  %v220 = vpack.c.b16 %v217, %v216
  %v221 = vpack.c.b16 %v219, %v218
  %vm224 = vcmask 261120
  %v226 = vsel %vm224, %v200, 0
  %v229 = vsel %vm224, %v201, 0
  %v232 = vsel %vm224, %v202, 0
  %v235 = vsel %vm224, %v203, 0
  %v238 = vsel %vm224, %v204, 0
  %v241 = vsel %vm224, %v205, 0
  %v244 = vsel %vm224, %v206, 0
  %v247 = vsel %vm224, %v207, 0
  %249 = vmatprep.subr.bf16.mxu0 0
  %250 = vmatpush1.bf16.msra.mxu0 %v220
  %251 = vmatprep.subr.bf16.mxu0 0
  %252 = vmatpush1.bf16.msra.mxu0 %v221
  %253 = vmatprep.subr.bf16.mxu0 0
  %254 = vmatpush1.bf16.msra.mxu0 0
  %255 = vmatprep.subr.bf16.mxu0 0
  %256 = vmatpush1.bf16.msra.mxu0 0
  %257 = vmatprep.subr.bf16.mxu0 0
  %258 = vmatpush1.bf16.msra.mxu0 0
  %259 = vmatprep.subr.bf16.mxu0 0
  %260 = vmatpush1.bf16.msra.mxu0 0
  %261 = vmatprep.subr.bf16.mxu0 0
  %262 = vmatpush1.bf16.msra.mxu0 0
  %263 = vmatprep.subr.bf16.mxu0 0
  %264 = vmatpush1.bf16.msra.mxu0 0
  %265 = vmatprep.subr.bf16.mxu0 0
  %266 = vmatpush1.bf16.msra.mxu0 0
  %267 = vmatprep.subr.bf16.mxu0 0
  %268 = vmatpush1.bf16.msra.mxu0 0
  %269 = vmatprep.subr.bf16.mxu0 0
  %270 = vmatpush1.bf16.msra.mxu0 0
  %271 = vmatprep.subr.bf16.mxu0 0
  %272 = vmatpush1.bf16.msra.mxu0 0
  %273 = vmatprep.subr.bf16.mxu0 0
  %274 = vmatpush1.bf16.msra.mxu0 0
  %275 = vmatprep.subr.bf16.mxu0 0
  %276 = vmatpush1.bf16.msra.mxu0 0
  %277 = vmatprep.subr.bf16.mxu0 0
  %278 = vmatpush1.bf16.msra.mxu0 0
  %279 = vmatprep.subr.bf16.mxu0 0
  %280 = vmatpush1.bf16.msra.mxu0 0
  %281 = vmatprep.mubr.bf16.mxu0 0
  %282 = vmatmul.mubr.bf16.gmra.mrb[0].mxu0 %v226
  %v283 = vpop.f32.mrb[0].mxu0
  %v284 = vadd.f32 0.0, %v283
  %v285 = vpop.f32.mrb[0].mxu0
  %v286 = vpop.f32.mrb[0].mxu0
  %v287 = vadd.f32 0.0, %v286
  %v288 = vpop.f32.mrb[0].mxu0
  %289 = vmatprep.mubr.bf16.mxu0 0
  %290 = vmatmul.mubr.bf16.gmra.mrb[0].mxu0 %v229
  %v291 = vpop.f32.mrb[0].mxu0
  %v292 = vadd.f32 0.0, %v291
  %v293 = vpop.f32.mrb[0].mxu0
  %v294 = vpop.f32.mrb[0].mxu0
  %v295 = vadd.f32 0.0, %v294
  %v296 = vpop.f32.mrb[0].mxu0
  %297 = vmatprep.mubr.bf16.mxu0 0
  %298 = vmatmul.mubr.bf16.gmra.mrb[0].mxu0 %v232
  %v299 = vpop.f32.mrb[0].mxu0
  %v300 = vadd.f32 0.0, %v299
  %v301 = vpop.f32.mrb[0].mxu0
  %v302 = vpop.f32.mrb[0].mxu0
  %v303 = vadd.f32 0.0, %v302
  %v304 = vpop.f32.mrb[0].mxu0
  %305 = vmatprep.mubr.bf16.mxu0 0
  %306 = vmatmul.mubr.bf16.gmra.mrb[0].mxu0 %v235
  %v307 = vpop.f32.mrb[0].mxu0
  %v308 = vadd.f32 0.0, %v307
  %v309 = vpop.f32.mrb[0].mxu0
  %v310 = vpop.f32.mrb[0].mxu0
  %v311 = vadd.f32 0.0, %v310
  %v312 = vpop.f32.mrb[0].mxu0
  %313 = vmatprep.mubr.bf16.mxu0 0
  %314 = vmatmul.mubr.bf16.gmra.mrb[0].mxu0 %v238
  %v315 = vpop.f32.mrb[0].mxu0
  %v316 = vadd.f32 0.0, %v315
  %v317 = vpop.f32.mrb[0].mxu0
  %v318 = vpop.f32.mrb[0].mxu0
  %v319 = vadd.f32 0.0, %v318
  %v320 = vpop.f32.mrb[0].mxu0
  %321 = vmatprep.mubr.bf16.mxu0 0
  %322 = vmatmul.mubr.bf16.gmra.mrb[0].mxu0 %v241
  %v323 = vpop.f32.mrb[0].mxu0
  %v324 = vadd.f32 0.0, %v323
  %v325 = vpop.f32.mrb[0].mxu0
  %v326 = vpop.f32.mrb[0].mxu0
  %v327 = vadd.f32 0.0, %v326
  %v328 = vpop.f32.mrb[0].mxu0
  %329 = vmatprep.mubr.bf16.mxu0 0
  %330 = vmatmul.mubr.bf16.gmra.mrb[0].mxu0 %v244
  %v331 = vpop.f32.mrb[0].mxu0
  %v332 = vadd.f32 0.0, %v331
  %v333 = vpop.f32.mrb[0].mxu0
  %v334 = vpop.f32.mrb[0].mxu0
  %v335 = vadd.f32 0.0, %v334
  %v336 = vpop.f32.mrb[0].mxu0
  %337 = vmatprep.mubr.bf16.mxu0 0
  %338 = vmatmul.mubr.bf16.gmra.mrb[0].mxu0 %v247
  %v339 = vpop.f32.mrb[0].mxu0
  %v340 = vadd.f32 0.0, %v339
  %v341 = vpop.f32.mrb[0].mxu0
  %v342 = vpop.f32.mrb[0].mxu0
  %v343 = vadd.f32 0.0, %v342
  %v344 = vpop.f32.mrb[0].mxu0
  %345 = vdwg.mxu0
  %v346 = vpack.c.bf16 %v287, %v284
  %v347 = vpack.c.bf16 %v295, %v292
  %v348 = vpack.c.bf16 %v303, %v300
  %v349 = vpack.c.bf16 %v311, %v308
  %v350 = vpack.c.bf16 %v319, %v316
  %v351 = vpack.c.bf16 %v327, %v324
  %v352 = vpack.c.bf16 %v335, %v332
  %v353 = vpack.c.bf16 %v343, %v340
  %v354 = vshrl.u32 %v22, 16
  %v355 = vpack.i.b16 %v354, %v354
  %v357 = vlaneseq
  %v358 = vshrl.u32 %v357, 7
  %v359 = vsub.s32 0, %v358
  %v360 = vrot.slane %v355, %v359
  %v361 = vadd.bf16 %v346, %v360
  %v362 = vadd.bf16 %v347, %v360
  %v363 = vadd.bf16 %v348, %v360
  %v364 = vadd.bf16 %v349, %v360
  %v365 = vadd.bf16 %v350, %v360
  %v366 = vadd.bf16 %v351, %v360
  %v367 = vadd.bf16 %v352, %v360
  %v368 = vadd.bf16 %v353, %v360
  %v369 = vmax.bf16 %v361, 0
  %v370 = vmax.bf16 %v362, 0
  %v371 = vmax.bf16 %v363, 0
  %v372 = vmax.bf16 %v364, 0
  %v373 = vmax.bf16 %v365, 0
  %v374 = vmax.bf16 %v366, 0
  %v375 = vmax.bf16 %v367, 0
  %v376 = vmax.bf16 %v368, 0
  %v377 = vld [vmem:[%s3] sm:$0xf]
  %v378 = vld [vmem:[%s3 + $0x4] sm:$0xf]
  %v379 = vld [vmem:[%s3 + $0x8] sm:$0xf]
  %v380 = vld [vmem:[%s3 + $0xc] sm:$0xf]
  %v385 = vunpack.c.l.b16 %v377
  %v386 = vunpack.c.l.b16 %v378
  %v387 = vunpack.c.l.b16 %v379
  %v388 = vunpack.c.l.b16 %v380
  %v389 = vpack.c.b16 %v386, %v385
  %v390 = vpack.c.b16 %v388, %v387
  %v394 = vsel %vm224, %v369, 0
  %v397 = vsel %vm224, %v370, 0
  %v400 = vsel %vm224, %v371, 0
  %v403 = vsel %vm224, %v372, 0
  %v406 = vsel %vm224, %v373, 0
  %v409 = vsel %vm224, %v374, 0
  %v412 = vsel %vm224, %v375, 0
  %v415 = vsel %vm224, %v376, 0
  %417 = vmatprep.subr.bf16.mxu0 0
  %418 = vmatpush1.bf16.msra.mxu0 %v389
  %419 = vmatprep.subr.bf16.mxu0 0
  %420 = vmatpush1.bf16.msra.mxu0 %v390
  %421 = vmatprep.subr.bf16.mxu0 0
  %422 = vmatpush1.bf16.msra.mxu0 0
  %423 = vmatprep.subr.bf16.mxu0 0
  %424 = vmatpush1.bf16.msra.mxu0 0
  %425 = vmatprep.subr.bf16.mxu0 0
  %426 = vmatpush1.bf16.msra.mxu0 0
  %427 = vmatprep.subr.bf16.mxu0 0
  %428 = vmatpush1.bf16.msra.mxu0 0
  %429 = vmatprep.subr.bf16.mxu0 0
  %430 = vmatpush1.bf16.msra.mxu0 0
  %431 = vmatprep.subr.bf16.mxu0 0
  %432 = vmatpush1.bf16.msra.mxu0 0
  %433 = vmatprep.subr.bf16.mxu0 0
  %434 = vmatpush1.bf16.msra.mxu0 0
  %435 = vmatprep.subr.bf16.mxu0 0
  %436 = vmatpush1.bf16.msra.mxu0 0
  %437 = vmatprep.subr.bf16.mxu0 0
  %438 = vmatpush1.bf16.msra.mxu0 0
  %439 = vmatprep.subr.bf16.mxu0 0
  %440 = vmatpush1.bf16.msra.mxu0 0
  %441 = vmatprep.subr.bf16.mxu0 0
  %442 = vmatpush1.bf16.msra.mxu0 0
  %443 = vmatprep.subr.bf16.mxu0 0
  %444 = vmatpush1.bf16.msra.mxu0 0
  %445 = vmatprep.subr.bf16.mxu0 0
  %446 = vmatpush1.bf16.msra.mxu0 0
  %447 = vmatprep.subr.bf16.mxu0 0
  %448 = vmatpush1.bf16.msra.mxu0 0
  %449 = vmatprep.mubr.bf16.mxu0 0
  %450 = vmatmul.mubr.bf16.gmra.mrb[0].mxu0 %v394
  %v451 = vpop.f32.mrb[0].mxu0
  %v452 = vadd.f32 0.0, %v451
  %v453 = vpop.f32.mrb[0].mxu0
  %v454 = vpop.f32.mrb[0].mxu0
  %v455 = vadd.f32 0.0, %v454
  %v456 = vpop.f32.mrb[0].mxu0
  %457 = vmatprep.mubr.bf16.mxu0 0
  %458 = vmatmul.mubr.bf16.gmra.mrb[0].mxu0 %v397
  %v459 = vpop.f32.mrb[0].mxu0
  %v460 = vadd.f32 0.0, %v459
  %v461 = vpop.f32.mrb[0].mxu0
  %v462 = vpop.f32.mrb[0].mxu0
  %v463 = vadd.f32 0.0, %v462
  %v464 = vpop.f32.mrb[0].mxu0
  %465 = vmatprep.mubr.bf16.mxu0 0
  %466 = vmatmul.mubr.bf16.gmra.mrb[0].mxu0 %v400
  %v467 = vpop.f32.mrb[0].mxu0
  %v468 = vadd.f32 0.0, %v467
  %v469 = vpop.f32.mrb[0].mxu0
  %v470 = vpop.f32.mrb[0].mxu0
  %v471 = vadd.f32 0.0, %v470
  %v472 = vpop.f32.mrb[0].mxu0
  %473 = vmatprep.mubr.bf16.mxu0 0
  %474 = vmatmul.mubr.bf16.gmra.mrb[0].mxu0 %v403
  %v475 = vpop.f32.mrb[0].mxu0
  %v476 = vadd.f32 0.0, %v475
  %v477 = vpop.f32.mrb[0].mxu0
  %v478 = vpop.f32.mrb[0].mxu0
  %v479 = vadd.f32 0.0, %v478
  %v480 = vpop.f32.mrb[0].mxu0
  %481 = vmatprep.mubr.bf16.mxu0 0
  %482 = vmatmul.mubr.bf16.gmra.mrb[0].mxu0 %v406
  %v483 = vpop.f32.mrb[0].mxu0
  %v484 = vadd.f32 0.0, %v483
  %v485 = vpop.f32.mrb[0].mxu0
  %v486 = vpop.f32.mrb[0].mxu0
  %v487 = vadd.f32 0.0, %v486
  %v488 = vpop.f32.mrb[0].mxu0
  %489 = vmatprep.mubr.bf16.mxu0 0
  %490 = vmatmul.mubr.bf16.gmra.mrb[0].mxu0 %v409
  %v491 = vpop.f32.mrb[0].mxu0
  %v492 = vadd.f32 0.0, %v491
  %v493 = vpop.f32.mrb[0].mxu0
  %v494 = vpop.f32.mrb[0].mxu0
  %v495 = vadd.f32 0.0, %v494
  %v496 = vpop.f32.mrb[0].mxu0
  %497 = vmatprep.mubr.bf16.mxu0 0
  %498 = vmatmul.mubr.bf16.gmra.mrb[0].mxu0 %v412
  %v499 = vpop.f32.mrb[0].mxu0
  %v500 = vadd.f32 0.0, %v499
  %v501 = vpop.f32.mrb[0].mxu0
  %v502 = vpop.f32.mrb[0].mxu0
  %v503 = vadd.f32 0.0, %v502
  %v504 = vpop.f32.mrb[0].mxu0
  %505 = vmatprep.mubr.bf16.mxu0 0
  %506 = vmatmul.mubr.bf16.gmra.mrb[0].mxu0 %v415
  %v507 = vpop.f32.mrb[0].mxu0
  %v508 = vadd.f32 0.0, %v507
  %v509 = vpop.f32.mrb[0].mxu0
  %v510 = vpop.f32.mrb[0].mxu0
  %v511 = vadd.f32 0.0, %v510
  %v512 = vpop.f32.mrb[0].mxu0
  %513 = vdwg.mxu0
  %v514 = vpack.c.bf16 %v455, %v452
  %v515 = vpack.c.bf16 %v463, %v460
  %v516 = vpack.c.bf16 %v471, %v468
  %v517 = vpack.c.bf16 %v479, %v476
  %v518 = vpack.c.bf16 %v487, %v484
  %v519 = vpack.c.bf16 %v495, %v492
  %v520 = vpack.c.bf16 %v503, %v500
  %v521 = vpack.c.bf16 %v511, %v508
  %v522 = vlaneseq
  %v523 = vshrl.u32 %v522, 7
  %v524 = vsub.s32 1, %v523
  %v525 = vrot.slane %v186, %v524
  %v526 = vadd.bf16 %v514, %v525
  %v527 = vadd.bf16 %v515, %v525
  %v528 = vadd.bf16 %v516, %v525
  %v529 = vadd.bf16 %v517, %v525
  %v530 = vadd.bf16 %v518, %v525
  %v531 = vadd.bf16 %v519, %v525
  %v532 = vadd.bf16 %v520, %v525
  %v533 = vadd.bf16 %v521, %v525
  %v534 = vmax.bf16 %v526, 0
  %v535 = vmax.bf16 %v527, 0
  %v536 = vmax.bf16 %v528, 0
  %v537 = vmax.bf16 %v529, 0
  %v538 = vmax.bf16 %v530, 0
  %v539 = vmax.bf16 %v531, 0
  %v540 = vmax.bf16 %v532, 0
  %v541 = vmax.bf16 %v533, 0
  %543 = vset.pattern.permute.xlu0 0
  %544 = vperm.xlu0 %543, %v21
  %v545 = vpop.permute.xlu0 %544
  %v547 = vrot.slane %v354, 1
  %v548 = vrot.slane %v545, 4
  %v551 = vsel %vm224, %v547, 0
  %v554 = vsel %vm224, %v534, 0
  %v557 = vsel %vm224, %v535, 0
  %v560 = vsel %vm224, %v536, 0
  %v563 = vsel %vm224, %v537, 0
  %v566 = vsel %vm224, %v538, 0
  %v569 = vsel %vm224, %v539, 0
  %v572 = vsel %vm224, %v540, 0
  %v575 = vsel %vm224, %v541, 0
  %577 = vmatprep.subr.bf16.mxu0 0
  %578 = vmatpush1.bf16.xpose.msra.mxu0 %v554
  %579 = vmatprep.subr.bf16.mxu0 0
  %580 = vmatpush1.bf16.xpose.msra.mxu0 %v557
  %581 = vmatprep.subr.bf16.mxu0 0
  %582 = vmatpush1.bf16.xpose.msra.mxu0 %v560
  %583 = vmatprep.subr.bf16.mxu0 0
  %584 = vmatpush1.bf16.xpose.msra.mxu0 %v563
  %585 = vmatprep.subr.bf16.mxu0 0
  %586 = vmatpush1.bf16.xpose.msra.mxu0 %v566
  %587 = vmatprep.subr.bf16.mxu0 0
  %588 = vmatpush1.bf16.xpose.msra.mxu0 %v569
  %589 = vmatprep.subr.bf16.mxu0 0
  %590 = vmatpush1.bf16.xpose.msra.mxu0 %v572
  %591 = vmatprep.subr.bf16.mxu0 0
  %592 = vmatpush1.bf16.xpose.msra.mxu0 %v575
  %593 = vmatprep.subr.bf16.mxu0 0
  %594 = vmatpush1.bf16.xpose.msra.mxu0 0
  %595 = vmatprep.subr.bf16.mxu0 0
  %596 = vmatpush1.bf16.xpose.msra.mxu0 0
  %597 = vmatprep.subr.bf16.mxu0 0
  %598 = vmatpush1.bf16.xpose.msra.mxu0 0
  %599 = vmatprep.subr.bf16.mxu0 0
  %600 = vmatpush1.bf16.xpose.msra.mxu0 0
  %601 = vmatprep.subr.bf16.mxu0 0
  %602 = vmatpush1.bf16.xpose.msra.mxu0 0
  %603 = vmatprep.subr.bf16.mxu0 0
  %604 = vmatpush1.bf16.xpose.msra.mxu0 0
  %605 = vmatprep.subr.bf16.mxu0 0
  %606 = vmatpush1.bf16.xpose.msra.mxu0 0
  %607 = vmatprep.subr.bf16.mxu0 0
  %608 = vmatpush1.bf16.xpose.msra.mxu0 0
  %609 = vmatprep.mubr.bf16.mxu0 0
  %610 = vmatmul.mubr.bf16.gmra.mrb[0].mxu0 %v551
  %v611 = vpop.f32.mrb[0].mxu0
  %v612 = vadd.f32 %v548, %v611
  %v613 = vpop.f32.mrb[0].mxu0
  %v614 = vpop.f32.mrb[0].mxu0
  %v615 = vpop.f32.mrb[0].mxu0
  %616 = vdwg.mxu0
  %617 = vst [vmem:[%s5] sm:$0x1] %v612
  // Predicated region
  $region22: #{w_discriminator_forward.1} parent=0 // pred_check
    _
  $region23: #{w_discriminator_forward.1} parent=0 // pred_check_branch
    %619 = sbr.rel (0) target = $region25
  $region24: #{w_discriminator_forward.1} parent=0 // pred_region
    _
  $region25: #{w_discriminator_forward.1} parent=0 // pred_fallthru
    _
  // Predicated region
  $region26: #{w_discriminator_forward.1} parent=0 // pred_check
    _
  $region27: #{w_discriminator_forward.1} parent=0 // pred_check_branch
    %621 = sbr.rel (0) target = $region29
  $region28: #{w_discriminator_forward.1} parent=0 // pred_region
    _
  $region29: #{w_discriminator_forward.1} parent=0 // pred_fallthru
    _

</llo_original>
